<compile_context>
chip_gen: v7x
topology: tpu7x:2x2x1
jax: 0.10.0
libtpu: 0.0.40
codegen_flags: <defaults>
</compile_context>

<pallas_src>
import math

import jax
import jax.numpy as jnp
from jax import lax
from jax.experimental import pallas as pl
from jax.experimental.pallas import tpu as pltpu

INF = 1000000000.0        # finite -INF sentinel, identical to the PyTorch module
NEG_BIG = -1.0e30         # init value for running maxima (finite, no NaN risk)

# ---- "config" + deterministic parameter init (dual_softmax branch) ----------
CONFIG = {
    "thr": 0.2,
    "border_rm": 2,
    "iter_thr": 0.1,
    "train_coarse_percent": 0.4,
    "train_pad_num_gt_min": 20,
    "match_type": "dual_softmax",
    "iter": 1,
}
TEMPERATURE = 10.0  # nn.Parameter(torch.tensor(10.0)) — deterministic init


def _round_up(x, m):
    return ((x + m - 1) // m) * m


def _default_tiling():
    """Generation-specific (tile, vmem_limit): big tiles on 128 MiB VMEM parts
    (v5e/v6e), small tiles on the 64 MiB part (v7x)."""
    vmem_bytes = 64 * 1024 * 1024
    try:
        info = pltpu.get_tpu_info()
        vmem_bytes = int(getattr(info, "vmem_capacity_bytes", vmem_bytes))
    except Exception:
        pass
    if vmem_bytes >= 96 * 1024 * 1024:
        return 512, 96 * 1024 * 1024       # v5e / v6e
    return 128, 40 * 1024 * 1024           # v7x


def _sim_tile(f0, f1t, b0, b1, scale):
    """sim tile = (f0 @ f1t) * (temperature / C) + mask biases.

    f1t is pre-transposed to (C, S) in the wrapper so the MXU sees a canonical
    (M,K)@(K,N) contraction (no per-step RHS relayout in the kernel).  Shared
    by both passes so pass-1 stats and pass-2 z are built from bit-identical
    sim values."""
    s = lax.dot_general(f0, f1t, (((1,), (0,)), ((), ())),
                        preferred_element_type=jnp.float32)   # bf16 MXU, f32 acc
    s = s * scale
    s = s + b0          # (TL, 1) broadcast : padding-mask bias of image 0
    s = s + b1          # (1, S)  broadcast : padding-mask bias of image 1
    return s


# -----------------------------------------------------------------------------
# Pass 1: row / column log-sum-exp + column-wise max of z (online over L)
# -----------------------------------------------------------------------------
def _stats_kernel_factory(scale):
    def kernel(f0_ref, f1_ref, b0_ref, b1_ref,
               rlse_ref, clse_ref, czmax_ref,
               cmax_sc, csum_sc, t_sc):
        lt = pl.program_id(1)

        @pl.when(lt == 0)
        def _():
            cmax_sc[...] = jnp.full(cmax_sc.shape, NEG_BIG, jnp.float32)
            csum_sc[...] = jnp.zeros(csum_sc.shape, jnp.float32)
            t_sc[...] = jnp.full(t_sc.shape, NEG_BIG, jnp.float32)

        sim = _sim_tile(f0_ref[0], f1_ref[0], b0_ref[0], b1_ref[0], scale)

        # row (softmax over S) log-sum-exp: complete within this tile
        row_max = jnp.max(sim, axis=1, keepdims=True)                  # (TL, 1)
        row_sum = jnp.sum(jnp.exp(sim - row_max), axis=1, keepdims=True)
        row_lse = row_max + jnp.log(row_sum)
        rlse_ref[0] = row_lse

        # column (softmax over L) log-sum-exp: online across L tiles
        tile_cmax = jnp.max(sim, axis=0, keepdims=True)                # (1, S)
        new_cmax = jnp.maximum(cmax_sc[...], tile_cmax)
        tile_csum = jnp.sum(jnp.exp(sim - new_cmax), axis=0, keepdims=True)
        csum_sc[...] = csum_sc[...] * jnp.exp(cmax_sc[...] - new_cmax) + tile_csum
        cmax_sc[...] = new_cmax

        # running max over L of z = 2*sim - row_lse (log-space column-NN stat)
        z = 2.0 * sim - row_lse
        t_sc[...] = jnp.maximum(t_sc[...], jnp.max(z, axis=0, keepdims=True))

        @pl.when(lt == pl.num_programs(1) - 1)
        def _():
            clse_ref[0] = cmax_sc[...] + jnp.log(csum_sc[...])
            czmax_ref[0] = t_sc[...]

    return kernel


# -----------------------------------------------------------------------------
# Pass 2: (optional) dense conf matrix + fused per-row mutual-NN extraction
# -----------------------------------------------------------------------------
def _match_kernel_factory(scale, emit_conf):
    def body(f0_ref, f1_ref, b0_ref, b1_ref,
             rlse_ref, clse_ref, czmax_ref, thr0_ref, thr1_ref,
             conf_ref, valid_ref, jid_ref, mconf_ref):
        sim = _sim_tile(f0_ref[0], f1_ref[0], b0_ref[0], b1_ref[0], scale)
        row_lse = rlse_ref[0]                          # (TL, 1) — pass-1 bits
        col_lse = clse_ref[0]                          # (1, S)

        # conf = softmax_L(sim) * softmax_S(sim) = exp(2*sim - row_lse - col_lse)
        z = 2.0 * sim - row_lse
        conf = jnp.exp(z - col_lse)                    # f32 in-register
        if conf_ref is not None:
            conf_ref[0] = conf.astype(conf_ref.dtype)  # cast only at the HBM store

        row_max = jnp.max(conf, axis=1, keepdims=True)  # (TL, 1)
        col_zmax = czmax_ref[0]                         # (1, S) = max_l z (pass 1)

        # threshold + border removal (thr0/thr1 carry a 2.0 sentinel > max(conf)
        # at border/padded positions) + mutual nearest neighbour.  The column
        # test compares in log-space (z vs pass-1 max of z): exp is monotone so
        # the decision is identical, but no dependence on exp() bit-equality.
        mnn = ((conf > thr0_ref[0]) & (conf > thr1_ref[0])
               & (conf == row_max) & (z == col_zmax))

        s_pad = conf.shape[1]
        iota = lax.broadcasted_iota(jnp.int32, conf.shape, 1)          # int32
        j_min = jnp.min(jnp.where(mnn, iota, jnp.int32(s_pad)),
                        axis=1, keepdims=True)                         # (TL, 1)
        valid = j_min < s_pad
        valid_f = valid.astype(jnp.float32)

        valid_ref[0] = valid_f
        jid_ref[0] = jnp.where(valid, j_min, 0)
        mconf_ref[0] = row_max * valid_f                # == conf[l, j] for valid rows

    if emit_conf:
        return body

    def body_no_conf(f0_ref, f1_ref, b0_ref, b1_ref,
                     rlse_ref, clse_ref, czmax_ref, thr0_ref, thr1_ref,
                     valid_ref, jid_ref, mconf_ref):
        body(f0_ref, f1_ref, b0_ref, b1_ref, rlse_ref, clse_ref, czmax_ref,
             thr0_ref, thr1_ref, None, valid_ref, jid_ref, mconf_ref)

    return body_no_conf


def _border_thr(h, w, b, thr):
    """Per-position effective threshold over a flattened (h*w,) axis: `thr`
    inside the valid region, 2.0 (> max possible conf) in the border band."""
    idx = jnp.arange(h * w)
    rows, cols = idx // w, idx % w
    if b <= 0:
        ok = jnp.ones((h * w,), bool)
    else:
        ok = (rows >= b) & (rows < h - b) & (cols >= b) & (cols < w - b)
    return jnp.where(ok, jnp.float32(thr), jnp.float32(2.0))


def coarse_matching_pallas(feat_c0, feat_c1, hw0_c, hw1_c,
                           mask_c0=None, mask_c1=None,
                           thr=CONFIG["thr"], border_rm=CONFIG["border_rm"],
                           temperature=TEMPERATURE, tl=None,
                           conf_dtype=jnp.bfloat16, emit_conf=True):
    """Returns (conf [N,L,S] (conf_dtype) or None, match_valid [N,L] f32,
    j_ids [N,L] i32, mconf [N,L] f32)."""
    N, L, C = feat_c0.shape
    S = feat_c1.shape[1]
    h0c, w0c = hw0_c
    h1c, w1c = hw1_c
    assert L == h0c * w0c and S == h1c * w1c

    # ---- tiling / padding geometry: lane-dense S, sublane-friendly L tiles ----
    default_tl, vmem_limit = _default_tiling()
    if tl is None:
        tl = default_tl
    tl = min(int(tl), _round_up(L, 16))
    tl = max(16, _round_up(tl, 16))       # multiple of 16 keeps bf16 stores dense
    l_pad = _round_up(L, tl)
    s_pad = _round_up(S, 128)
    n_lt = l_pad // tl
    scale = float(temperature) / float(C)   # folds both 1/sqrt(C) pre-scales

    # ---- bf16 features for the MXU, zero-padded; RHS pre-transposed to (C,S) ----
    f0 = jnp.zeros((N, l_pad, C), jnp.bfloat16).at[:, :L, :].set(
        feat_c0.astype(jnp.bfloat16))
    f1t = jnp.zeros((N, C, s_pad), jnp.bfloat16).at[:, :, :S].set(
        jnp.swapaxes(feat_c1.astype(jnp.bfloat16), 1, 2))

    # ---- additive padding-mask biases (replace masked_fill(-INF)) ----
    if mask_c0 is None:
        b0_core = jnp.zeros((N, L), jnp.float32)
    else:
        b0_core = (mask_c0.astype(jnp.float32) - 1.0) * INF
    if mask_c1 is None:
        b1_core = jnp.zeros((N, S), jnp.float32)
    else:
        b1_core = (mask_c1.astype(jnp.float32) - 1.0) * INF
    b0 = jnp.full((N, l_pad, 1), -INF, jnp.float32).at[:, :L, 0].set(b0_core)
    b1 = jnp.full((N, 1, s_pad), -INF, jnp.float32).at[:, 0, :S].set(b1_core)

    # ---- border removal folded into per-row / per-col thresholds ----
    # TODO(synk): mask_border_with_padding (per-batch extents from mask0/mask1)
    # not implemented; the static mask_border rule is applied in both cases.
    thr0 = jnp.full((1, l_pad, 1), 2.0, jnp.float32).at[:, :L, 0].set(
        _border_thr(h0c, w0c, border_rm, thr))
    thr1 = jnp.full((1, 1, s_pad), 2.0, jnp.float32).at[:, 0, :S].set(
        _border_thr(h1c, w1c, border_rm, thr))

    # ------------------------- pass 1: statistics ----------------------------
    cost1 = pl.CostEstimate(
        flops=2 * N * l_pad * s_pad * C + 8 * N * l_pad * s_pad,
        transcendentals=2 * N * l_pad * s_pad,
        bytes_accessed=(f0.size + f1t.size) * 2 + (b0.size + b1.size) * 4
        + 4 * N * (l_pad + 2 * s_pad))

    row_lse, col_lse, col_zmax = pl.pallas_call(
        _stats_kernel_factory(scale),
        out_shape=(
            jax.ShapeDtypeStruct((N, l_pad, 1), jnp.float32),
            jax.ShapeDtypeStruct((N, 1, s_pad), jnp.float32),
            jax.ShapeDtypeStruct((N, 1, s_pad), jnp.float32),
        ),
        grid_spec=pltpu.PrefetchScalarGridSpec(
            num_scalar_prefetch=0,
            grid=(N, n_lt),
            in_specs=[
                pl.BlockSpec((1, tl, C), lambda n, lt: (n, lt, 0)),
                pl.BlockSpec((1, C, s_pad), lambda n, lt: (n, 0, 0)),
                pl.BlockSpec((1, tl, 1), lambda n, lt: (n, lt, 0)),
                pl.BlockSpec((1, 1, s_pad), lambda n, lt: (n, 0, 0)),
            ],
            out_specs=[
                pl.BlockSpec((1, tl, 1), lambda n, lt: (n, lt, 0)),
                pl.BlockSpec((1, 1, s_pad), lambda n, lt: (n, 0, 0)),
                pl.BlockSpec((1, 1, s_pad), lambda n, lt: (n, 0, 0)),
            ],
            scratch_shapes=[
                pltpu.VMEM((1, s_pad), jnp.float32),   # running col max(sim)
                pltpu.VMEM((1, s_pad), jnp.float32),   # running col sum(exp)
                pltpu.VMEM((1, s_pad), jnp.float32),   # running col max(z)
            ],
        ),
        compiler_params=pltpu.CompilerParams(
            dimension_semantics=("parallel", "arbitrary"),
            vmem_limit_bytes=vmem_limit),
        cost_estimate=cost1,
    )(f0, f1t, b0, b1)

    # ------------------- pass 2: conf matrix + fused matching ----------------
    conf_bytes = N * l_pad * s_pad * jnp.dtype(conf_dtype).itemsize if emit_conf else 0
    cost2 = pl.CostEstimate(
        flops=2 * N * l_pad * s_pad * C + 10 * N * l_pad * s_pad,
        transcendentals=N * l_pad * s_pad,
        bytes_accessed=(f0.size + f1t.size) * 2 + (b0.size + b1.size) * 4
        + 4 * N * (2 * l_pad + 2 * s_pad) + conf_bytes)

    out_shape2 = []
    out_specs2 = []
    if emit_conf:
        out_shape2.append(jax.ShapeDtypeStruct((N, l_pad, s_pad), conf_dtype))
        out_specs2.append(pl.BlockSpec((1, tl, s_pad), lambda n, lt: (n, lt, 0)))
    out_shape2 += [
        jax.ShapeDtypeStruct((N, l_pad, 1), jnp.float32),
        jax.ShapeDtypeStruct((N, l_pad, 1), jnp.int32),
        jax.ShapeDtypeStruct((N, l_pad, 1), jnp.float32),
    ]
    out_specs2 += [pl.BlockSpec((1, tl, 1), lambda n, lt: (n, lt, 0))] * 3

    outs = pl.pallas_call(
        _match_kernel_factory(scale, emit_conf),
        out_shape=tuple(out_shape2),
        grid_spec=pltpu.PrefetchScalarGridSpec(
            num_scalar_prefetch=0,
            grid=(N, n_lt),
            in_specs=[
                pl.BlockSpec((1, tl, C), lambda n, lt: (n, lt, 0)),
                pl.BlockSpec((1, C, s_pad), lambda n, lt: (n, 0, 0)),
                pl.BlockSpec((1, tl, 1), lambda n, lt: (n, lt, 0)),
                pl.BlockSpec((1, 1, s_pad), lambda n, lt: (n, 0, 0)),
                pl.BlockSpec((1, tl, 1), lambda n, lt: (n, lt, 0)),
                pl.BlockSpec((1, 1, s_pad), lambda n, lt: (n, 0, 0)),
                pl.BlockSpec((1, 1, s_pad), lambda n, lt: (n, 0, 0)),
                pl.BlockSpec((1, tl, 1), lambda n, lt: (0, lt, 0)),
                pl.BlockSpec((1, 1, s_pad), lambda n, lt: (0, 0, 0)),
            ],
            out_specs=out_specs2,
        ),
        compiler_params=pltpu.CompilerParams(
            dimension_semantics=("parallel", "parallel"),
            vmem_limit_bytes=vmem_limit),
        cost_estimate=cost2,
    )(f0, f1t, b0, b1, row_lse, col_lse, col_zmax, thr0, thr1)

    if emit_conf:
        conf_pad, valid_pad, jid_pad, mconf_pad = outs
        conf = conf_pad[:, :L, :S]
    else:
        valid_pad, jid_pad, mconf_pad = outs
        conf = None

    match_valid = valid_pad[:, :L, 0]
    j_ids = jid_pad[:, :L, 0]
    mconf = mconf_pad[:, :L, 0]
    return conf, match_valid, j_ids, mconf


# -----------------------------------------------------------------------------
# Plain-JAX glue (dense fixed-shape analogues of the torch.where extraction)
# -----------------------------------------------------------------------------
def get_coarse_match_dense(match_valid, j_ids, mconf, hw0_i, hw0_c, hw1_c):
    """torch.where's variable-length (b_ids, i_ids, j_ids) have no static-shape
    Pallas/JAX equivalent; rows are returned densely with `match_valid` flags."""
    N, L = match_valid.shape
    scale = hw0_i[0] / hw0_c[0]   # reference uses the image-0 scale for both sets
    i_ids = jnp.arange(L)
    mk0 = jnp.stack([(i_ids % hw0_c[1]).astype(jnp.float32),
                     (i_ids // hw0_c[1]).astype(jnp.float32)], -1) * scale
    mkpts0 = jnp.broadcast_to(mk0[None], (N, L, 2))
    mkpts1 = jnp.stack([(j_ids % hw1_c[1]).astype(jnp.float32),
                        (j_ids // hw1_c[1]).astype(jnp.float32)], -1) * scale
    return {
        "match_valid": match_valid,   # 1 where a mutual-NN match survives thr/border
        "j_ids": j_ids,
        "mconf": mconf,
        "mkpts0_c": mkpts0,
        "mkpts1_c": mkpts1,
    }


def get_offset_match_dense(flow, hw0_i, hw0_c):
    """Plain-JAX glue for get_offset_match_work (dense form). flow: [layer,B,H,W,4]."""
    layer, B, H, W, _ = flow.shape
    off = flow.reshape(layer, B, H * W, 4)
    conf = off[..., 2:].mean(axis=-1)                     # [layer, B, HW]
    mask_conf = conf < 2.0
    mask_conf = mask_conf.at[:, :, 0].set(True)
    scale = hw0_i[0] / hw0_c[0]
    i_ids = jnp.arange(H * W)
    i_coor = jnp.stack([(i_ids % hw0_c[1]).astype(jnp.float32),
                        (i_ids // hw0_c[1]).astype(jnp.float32)], -1) * scale
    j_coor = off[..., :2] * scale                          # [layer, B, HW, 2]
    return {"mask_conf": mask_conf, "conf": conf,
            "i_coor": i_coor, "j_coor": j_coor}


# TODO(synk): training-time random GT padding (torch.randint over spv_* ids) and
# the iter>1 refinement path (get_top_k_pairs / find_fundamental /
# sampson_epipolar_distance) are data-dependent / external-library code with no
# clean static-shape Pallas equivalent; not implemented (CONFIG['iter'] == 1).


def _softmax(x, axis):
    m = jnp.max(x, axis=axis, keepdims=True)
    e = jnp.exp(x - m)
    return e / jnp.sum(e, axis=axis, keepdims=True)


if __name__ == "__main__":
    key = jax.random.PRNGKey(0)
    k0, k1, k2, k3 = jax.random.split(key, 4)

    N = 2
    h0c, w0c = 8, 8
    h1c, w1c = 8, 8
    L, S = h0c * w0c, h1c * w1c
    C = 32
    hw0_i = (64, 64)   # coarse scale = 64 / 8 = 8
    hw0_c = (h0c, w0c)
    hw1_c = (h1c, w1c)

    feat_c0 = jax.random.normal(k0, (N, L, C), jnp.float32)
    feat_c1 = jax.random.normal(k1, (N, S, C), jnp.float32)

    layer_num = 2
    flow0 = jax.random.normal(k2, (layer_num, N, h0c, w0c, 4), jnp.float32)
    flow1 = jax.random.normal(k3, (layer_num, N, h1c, w1c, 4), jnp.float32)
    flow_list = jnp.stack([flow0, flow1], axis=0)

    # tl=32 -> two L-tiles: exercises the online column-softmax accumulation;
    # S=64 -> padded to 128: exercises lane-dense padding.

    # ---- run 1: f32 conf output (exact-property checks) ----
    conf32, match_valid, j_ids, mconf = coarse_matching_pallas(
        feat_c0, feat_c1, hw0_c, hw1_c, tl=32, conf_dtype=jnp.float32)
    conf32 = jax.block_until_ready(conf32)
    match_valid = jax.block_until_ready(match_valid)
    j_ids = jax.block_until_ready(j_ids)
    mconf = jax.block_until_ready(mconf)

    # ---- run 2: default bf16 conf output (training path, halved writeback) ----
    conf_bf, valid_bf, jid_bf, mconf_bf = coarse_matching_pallas(
        feat_c0, feat_c1, hw0_c, hw1_c, tl=32)
    conf_bf = jax.block_until_ready(conf_bf)

    # ---- run 3: inference path, dense conf matrix skipped entirely ----
    conf_none, valid_nc, jid_nc, mconf_nc = coarse_matching_pallas(
        feat_c0, feat_c1, hw0_c, hw1_c, tl=32, emit_conf=False)
    valid_nc = jax.block_until_ready(valid_nc)
    assert conf_none is None

    # glue: coarse-match extraction + offset match bookkeeping
    matches = get_coarse_match_dense(match_valid, j_ids, mconf, hw0_i, hw0_c, hw1_c)
    offs_l = get_offset_match_dense(flow_list[0], hw0_i, hw0_c)
    offs_r = get_offset_match_dense(flow_list[1], hw0_i, hw0_c)
    jax.block_until_ready(matches["mconf"])
    jax.block_until_ready(offs_l["conf"])
    jax.block_until_ready(offs_r["conf"])

    # ---- correctness checks against a plain-JAX reference (bf16-rounded feats) ----
    f0r = feat_c0.astype(jnp.bfloat16).astype(jnp.float32) / math.sqrt(C)
    f1r = feat_c1.astype(jnp.bfloat16).astype(jnp.float32) / math.sqrt(C)
    sim_ref = jnp.einsum("nlc,nsc->nls", f0r, f1r) * TEMPERATURE
    conf_ref = _softmax(sim_ref, 1) * _softmax(sim_ref, 2)

    err32 = float(jnp.max(jnp.abs(conf32 - conf_ref)))
    assert err32 < 5e-3, f"f32 conf mismatch vs reference: {err32}"
    err_bf = float(jnp.max(jnp.abs(conf_bf.astype(jnp.float32) - conf_ref)))
    assert err_bf < 1.5e-2, f"bf16 conf mismatch vs reference: {err_bf}"

    assert conf32.shape == (N, L, S) and conf_bf.shape == (N, L, S)
    assert bool(jnp.all(conf32 >= 0.0)) and bool(jnp.all(conf32 <= 1.0 + 1e-4))
    assert bool(jnp.all((match_valid == 0.0) | (match_valid == 1.0)))
    assert bool(jnp.all((j_ids >= 0) & (j_ids < S)))
    # for valid rows, mconf must equal the row max of conf (mutual-NN property)
    row_max_ref = conf32.max(axis=2)
    ok_rows = jnp.where(match_valid > 0.0,
                        jnp.abs(mconf - row_max_ref) < 1e-6, True)
    assert bool(jnp.all(ok_rows))
    assert bool(jnp.all(jnp.where(match_valid > 0.0, mconf > CONFIG["thr"], True)))

    # match decisions must be identical across the three pass-2 variants
    for (v2, j2, m2) in ((valid_bf, jid_bf, mconf_bf), (valid_nc, jid_nc, mconf_nc)):
        assert bool(jnp.all(v2 == match_valid))
        assert bool(jnp.all(jnp.where(match_valid > 0.0, j2 == j_ids, True)))
        assert float(jnp.max(jnp.abs(m2 - mconf))) < 1e-6

    print("KERNEL_OK")
</pallas_src>

<mosaic_0001>
module attributes {stable_mosaic.version = 11 : i64} {
  func.func @kernel(%arg0: i32, %arg1: i32, %arg2: memref<1x32x32xbf16, #tpu.memory_space<vmem>>, %arg3: memref<1x32x128xbf16, #tpu.memory_space<vmem>>, %arg4: memref<1x32x1xf32, #tpu.memory_space<vmem>>, %arg5: memref<1x1x128xf32, #tpu.memory_space<vmem>>, %arg6: memref<1x32x1xf32, #tpu.memory_space<vmem>>, %arg7: memref<1x1x128xf32, #tpu.memory_space<vmem>>, %arg8: memref<1x1x128xf32, #tpu.memory_space<vmem>>, %arg9: memref<1x128xf32, #tpu.memory_space<vmem>>, %arg10: memref<1x128xf32, #tpu.memory_space<vmem>>, %arg11: memref<1x128xf32, #tpu.memory_space<vmem>>) attributes {dimension_semantics = [#tpu.dimension_semantics<parallel>, #tpu.dimension_semantics<arbitrary>], iteration_bounds = array<i64: 2, 2>, scalar_prefetch = 0 : i64, scratch_operands = 3 : i64, tpu.core_type = #tpu.core_type<tc>, window_params = [{transform_indices = @transform_0, window_bounds = array<i64: 1, 32, 32>}, {transform_indices = @transform_1, window_bounds = array<i64: 1, 32, 128>}, {transform_indices = @transform_2, window_bounds = array<i64: 1, 32, 1>}, {transform_indices = @transform_3, window_bounds = array<i64: 1, 1, 128>}, {transform_indices = @transform_4, window_bounds = array<i64: 1, 32, 1>}, {transform_indices = @transform_5, window_bounds = array<i64: 1, 1, 128>}, {transform_indices = @transform_6, window_bounds = array<i64: 1, 1, 128>}]} {
    %c0_i32 = arith.constant 0 : i32
    %0 = arith.cmpi eq, %arg1, %c0_i32 : i32
    %1 = arith.extui %0 : i1 to i32
    %c0_i32_0 = arith.constant 0 : i32
    %2 = arith.cmpi ne, %1, %c0_i32_0 : i32
    scf.if %2 {
      %cst_37 = arith.constant -1.000000e+30 : f32
      %59 = vector.broadcast %cst_37 : f32 to vector<1x128xf32>
      %c0_38 = arith.constant 0 : index
      %c0_39 = arith.constant 0 : index
      %60 = vector.load %arg9[%c0_38, %c0_39] : memref<1x128xf32, #tpu.memory_space<vmem>>, vector<1x128xf32>
      tpu.vector_store %arg9[%c0_38, %c0_39], %59 {strides = array<i32>} : memref<1x128xf32, #tpu.memory_space<vmem>>, vector<1x128xf32>,
      %cst_40 = arith.constant 0.000000e+00 : f32
      %61 = vector.broadcast %cst_40 : f32 to vector<1x128xf32>
      %c0_41 = arith.constant 0 : index
      %c0_42 = arith.constant 0 : index
      %62 = vector.load %arg10[%c0_41, %c0_42] : memref<1x128xf32, #tpu.memory_space<vmem>>, vector<1x128xf32>
      tpu.vector_store %arg10[%c0_41, %c0_42], %61 {strides = array<i32>} : memref<1x128xf32, #tpu.memory_space<vmem>>, vector<1x128xf32>,
      %cst_43 = arith.constant -1.000000e+30 : f32
      %63 = vector.broadcast %cst_43 : f32 to vector<1x128xf32>
      %c0_44 = arith.constant 0 : index
      %c0_45 = arith.constant 0 : index
      %64 = vector.load %arg11[%c0_44, %c0_45] : memref<1x128xf32, #tpu.memory_space<vmem>>, vector<1x128xf32>
      tpu.vector_store %arg11[%c0_44, %c0_45], %63 {strides = array<i32>} : memref<1x128xf32, #tpu.memory_space<vmem>>, vector<1x128xf32>,
    } else {
    }
    %c0 = arith.constant 0 : index
    %c0_1 = arith.constant 0 : index
    %c0_2 = arith.constant 0 : index
    %3 = vector.load %arg2[%c0, %c0_1, %c0_2] : memref<1x32x32xbf16, #tpu.memory_space<vmem>>, vector<1x32x32xbf16>
    %4 = vector.shape_cast %3 : vector<1x32x32xbf16> to vector<32x32xbf16>
    %c0_3 = arith.constant 0 : index
    %c0_4 = arith.constant 0 : index
    %c0_5 = arith.constant 0 : index
    %5 = vector.load %arg3[%c0_3, %c0_4, %c0_5] : memref<1x32x128xbf16, #tpu.memory_space<vmem>>, vector<1x32x128xbf16>
    %6 = vector.shape_cast %5 : vector<1x32x128xbf16> to vector<32x128xbf16>
    %c0_6 = arith.constant 0 : index
    %c0_7 = arith.constant 0 : index
    %c0_8 = arith.constant 0 : index
    %7 = vector.load %arg4[%c0_6, %c0_7, %c0_8] : memref<1x32x1xf32, #tpu.memory_space<vmem>>, vector<1x32x1xf32>
    %8 = vector.shape_cast %7 : vector<1x32x1xf32> to vector<32x1xf32>
    %c0_9 = arith.constant 0 : index
    %c0_10 = arith.constant 0 : index
    %c0_11 = arith.constant 0 : index
    %9 = vector.load %arg5[%c0_9, %c0_10, %c0_11] : memref<1x1x128xf32, #tpu.memory_space<vmem>>, vector<1x1x128xf32>
    %10 = vector.shape_cast %9 : vector<1x1x128xf32> to vector<1x128xf32>
    %cst = arith.constant dense<0.000000e+00> : vector<32x128xf32>
    %11 = tpu.matmul %4, %6, %cst {dimension_numbers = #tpu.dot_dimension_numbers<[1], [0], [0], [1], [0, 0, 1, 1], [], []>} : vector<32x32xbf16>, vector<32x128xbf16>, vector<32x128xf32> -> vector<32x128xf32>
    %cst_12 = arith.constant 3.125000e-01 : f32
    %12 = vector.broadcast %cst_12 : f32 to vector<32x128xf32>
    %13 = arith.mulf %11, %12 : vector<32x128xf32>
    %14 = vector.broadcast %8 : vector<32x1xf32> to vector<32x128xf32>
    %15 = arith.addf %13, %14 : vector<32x128xf32>
    %16 = vector.broadcast %10 : vector<1x128xf32> to vector<32x128xf32>
    %17 = arith.addf %15, %16 : vector<32x128xf32>
    %cst_13 = arith.constant dense<0xFF800000> : vector<32xf32>
    %18 = vector.multi_reduction <maximumf>, %17, %cst_13 [1] : vector<32x128xf32> to vector<32xf32>
    %19 = vector.shape_cast %18 : vector<32xf32> to vector<32x1xf32>
    %20 = vector.broadcast %19 : vector<32x1xf32> to vector<32x128xf32>
    %21 = arith.subf %17, %20 : vector<32x128xf32>
    %22 = math.exp %21 : vector<32x128xf32>
    %cst_14 = arith.constant dense<0.000000e+00> : vector<32xf32>
    %23 = vector.multi_reduction <add>, %22, %cst_14 [1] : vector<32x128xf32> to vector<32xf32>
    %24 = vector.shape_cast %23 : vector<32xf32> to vector<32x1xf32>
    %25 = math.log %24 : vector<32x1xf32>
    %26 = arith.addf %19, %25 : vector<32x1xf32>
    %c0_15 = arith.constant 0 : index
    %c0_16 = arith.constant 0 : index
    %c0_17 = arith.constant 0 : index
    %27 = vector.load %arg6[%c0_15, %c0_16, %c0_17] : memref<1x32x1xf32, #tpu.memory_space<vmem>>, vector<1x32x1xf32>
    %28 = vector.shape_cast %27 : vector<1x32x1xf32> to vector<32x1xf32>
    %29 = vector.shape_cast %26 : vector<32x1xf32> to vector<1x32x1xf32>
    tpu.vector_store %arg6[%c0_15, %c0_16, %c0_17], %29 {strides = array<i32>} : memref<1x32x1xf32, #tpu.memory_space<vmem>>, vector<1x32x1xf32>,
    %cst_18 = arith.constant dense<0xFF800000> : vector<128xf32>
    %30 = vector.multi_reduction <maximumf>, %17, %cst_18 [0] : vector<32x128xf32> to vector<128xf32>
    %31 = vector.shape_cast %30 : vector<128xf32> to vector<1x128xf32>
    %c0_19 = arith.constant 0 : index
    %c0_20 = arith.constant 0 : index
    %32 = vector.load %arg9[%c0_19, %c0_20] : memref<1x128xf32, #tpu.memory_space<vmem>>, vector<1x128xf32>
    %33 = arith.maximumf %32, %31 : vector<1x128xf32>
    %34 = vector.broadcast %33 : vector<1x128xf32> to vector<32x128xf32>
    %35 = arith.subf %17, %34 : vector<32x128xf32>
    %36 = math.exp %35 : vector<32x128xf32>
    %cst_21 = arith.constant dense<0.000000e+00> : vector<128xf32>
    %37 = vector.multi_reduction <add>, %36, %cst_21 [0] : vector<32x128xf32> to vector<128xf32>
    %38 = vector.shape_cast %37 : vector<128xf32> to vector<1x128xf32>
    %c0_22 = arith.constant 0 : index
    %c0_23 = arith.constant 0 : index
    %39 = vector.load %arg10[%c0_22, %c0_23] : memref<1x128xf32, #tpu.memory_space<vmem>>, vector<1x128xf32>
    %c0_24 = arith.constant 0 : index
    %c0_25 = arith.constant 0 : index
    %40 = vector.load %arg9[%c0_24, %c0_25] : memref<1x128xf32, #tpu.memory_space<vmem>>, vector<1x128xf32>
    %41 = arith.subf %40, %33 : vector<1x128xf32>
    %42 = math.exp %41 : vector<1x128xf32>
    %43 = arith.mulf %39, %42 : vector<1x128xf32>
    %44 = arith.addf %43, %38 : vector<1x128xf32>
    %c0_26 = arith.constant 0 : index
    %c0_27 = arith.constant 0 : index
    %45 = vector.load %arg10[%c0_26, %c0_27] : memref<1x128xf32, #tpu.memory_space<vmem>>, vector<1x128xf32>
    tpu.vector_store %arg10[%c0_26, %c0_27], %44 {strides = array<i32>} : memref<1x128xf32, #tpu.memory_space<vmem>>, vector<1x128xf32>,
    %c0_28 = arith.constant 0 : index
    %c0_29 = arith.constant 0 : index
    %46 = vector.load %arg9[%c0_28, %c0_29] : memref<1x128xf32, #tpu.memory_space<vmem>>, vector<1x128xf32>
    tpu.vector_store %arg9[%c0_28, %c0_29], %33 {strides = array<i32>} : memref<1x128xf32, #tpu.memory_space<vmem>>, vector<1x128xf32>,
    %cst_30 = arith.constant 2.000000e+00 : f32
    %47 = vector.broadcast %cst_30 : f32 to vector<32x128xf32>
    %48 = arith.mulf %47, %17 : vector<32x128xf32>
    %49 = vector.broadcast %26 : vector<32x1xf32> to vector<32x128xf32>
    %50 = arith.subf %48, %49 : vector<32x128xf32>
    %c0_31 = arith.constant 0 : index
    %c0_32 = arith.constant 0 : index
    %51 = vector.load %arg11[%c0_31, %c0_32] : memref<1x128xf32, #tpu.memory_space<vmem>>, vector<1x128xf32>
    %cst_33 = arith.constant dense<0xFF800000> : vector<128xf32>
    %52 = vector.multi_reduction <maximumf>, %50, %cst_33 [0] : vector<32x128xf32> to vector<128xf32>
    %53 = vector.shape_cast %52 : vector<128xf32> to vector<1x128xf32>
    %54 = arith.maximumf %51, %53 : vector<1x128xf32>
    %c0_34 = arith.constant 0 : index
    %c0_35 = arith.constant 0 : index
    %55 = vector.load %arg11[%c0_34, %c0_35] : memref<1x128xf32, #tpu.memory_space<vmem>>, vector<1x128xf32>
    tpu.vector_store %arg11[%c0_34, %c0_35], %54 {strides = array<i32>} : memref<1x128xf32, #tpu.memory_space<vmem>>, vector<1x128xf32>,
    %c1_i32 = arith.constant 1 : i32
    %56 = arith.cmpi eq, %arg1, %c1_i32 : i32
    %57 = arith.extui %56 : i1 to i32
    %c0_i32_36 = arith.constant 0 : i32
    %58 = arith.cmpi ne, %57, %c0_i32_36 : i32
    scf.if %58 {
      %c0_37 = arith.constant 0 : index
      %c0_38 = arith.constant 0 : index
      %59 = vector.load %arg9[%c0_37, %c0_38] : memref<1x128xf32, #tpu.memory_space<vmem>>, vector<1x128xf32>
      %c0_39 = arith.constant 0 : index
      %c0_40 = arith.constant 0 : index
      %60 = vector.load %arg10[%c0_39, %c0_40] : memref<1x128xf32, #tpu.memory_space<vmem>>, vector<1x128xf32>
      %61 = math.log %60 : vector<1x128xf32>
      %62 = arith.addf %59, %61 : vector<1x128xf32>
      %c0_41 = arith.constant 0 : index
      %c0_42 = arith.constant 0 : index
      %c0_43 = arith.constant 0 : index
      %63 = vector.load %arg7[%c0_41, %c0_42, %c0_43] : memref<1x1x128xf32, #tpu.memory_space<vmem>>, vector<1x1x128xf32>
      %64 = vector.shape_cast %63 : vector<1x1x128xf32> to vector<1x128xf32>
      %65 = vector.shape_cast %62 : vector<1x128xf32> to vector<1x1x128xf32>
      tpu.vector_store %arg7[%c0_41, %c0_42, %c0_43], %65 {strides = array<i32>} : memref<1x1x128xf32, #tpu.memory_space<vmem>>, vector<1x1x128xf32>,
      %c0_44 = arith.constant 0 : index
      %c0_45 = arith.constant 0 : index
      %66 = vector.load %arg11[%c0_44, %c0_45] : memref<1x128xf32, #tpu.memory_space<vmem>>, vector<1x128xf32>
      %c0_46 = arith.constant 0 : index
      %c0_47 = arith.constant 0 : index
      %c0_48 = arith.constant 0 : index
      %67 = vector.load %arg8[%c0_46, %c0_47, %c0_48] : memref<1x1x128xf32, #tpu.memory_space<vmem>>, vector<1x1x128xf32>
      %68 = vector.shape_cast %67 : vector<1x1x128xf32> to vector<1x128xf32>
      %69 = vector.shape_cast %66 : vector<1x128xf32> to vector<1x1x128xf32>
      tpu.vector_store %arg8[%c0_46, %c0_47, %c0_48], %69 {strides = array<i32>} : memref<1x1x128xf32, #tpu.memory_space<vmem>>, vector<1x1x128xf32>,
    } else {
    }
    return
  }
  func.func @transform_0(%arg0: i32, %arg1: i32) -> (i32, i32, i32) {
    %c0_i32 = arith.constant 0 : i32
    %c0_i32_0 = arith.constant 0 : i32
    return %arg0, %arg1, %c0_i32 : i32, i32, i32
  }
  func.func @transform_1(%arg0: i32, %arg1: i32) -> (i32, i32, i32) {
    %c0_i32 = arith.constant 0 : i32
    %c0_i32_0 = arith.constant 0 : i32
    %c0_i32_1 = arith.constant 0 : i32
    return %arg0, %c0_i32, %c0_i32_0 : i32, i32, i32
  }
  func.func @transform_2(%arg0: i32, %arg1: i32) -> (i32, i32, i32) {
    %c0_i32 = arith.constant 0 : i32
    %c0_i32_0 = arith.constant 0 : i32
    return %arg0, %arg1, %c0_i32 : i32, i32, i32
  }
  func.func @transform_3(%arg0: i32, %arg1: i32) -> (i32, i32, i32) {
    %c0_i32 = arith.constant 0 : i32
    %c0_i32_0 = arith.constant 0 : i32
    %c0_i32_1 = arith.constant 0 : i32
    return %arg0, %c0_i32, %c0_i32_0 : i32, i32, i32
  }
  func.func @transform_4(%arg0: i32, %arg1: i32) -> (i32, i32, i32) {
    %c0_i32 = arith.constant 0 : i32
    %c0_i32_0 = arith.constant 0 : i32
    return %arg0, %arg1, %c0_i32 : i32, i32, i32
  }
  func.func @transform_5(%arg0: i32, %arg1: i32) -> (i32, i32, i32) {
    %c0_i32 = arith.constant 0 : i32
    %c0_i32_0 = arith.constant 0 : i32
    %c0_i32_1 = arith.constant 0 : i32
    return %arg0, %c0_i32, %c0_i32_0 : i32, i32, i32
  }
  func.func @transform_6(%arg0: i32, %arg1: i32) -> (i32, i32, i32) {
    %c0_i32 = arith.constant 0 : i32
    %c0_i32_0 = arith.constant 0 : i32
    %c0_i32_1 = arith.constant 0 : i32
    return %arg0, %c0_i32, %c0_i32_0 : i32, i32, i32
  }
}

</mosaic_0001>

<llo_original>
// kernel: tpu_custom_call.1
$region0: #{tpu_custom_call.1}
  #allocation0 [shape = 'u32[]', space=smem, size = 0x4, offset = 0x4, fixed_abs, tag = 'smem constant byte address 0x4 - core index']
  #allocation1 [shape = 'u32[144,128]{1,0:T(1,128)}', space=vmem, size = 0x12000, scoped, tag = 'internal scratch']
  #allocation2 [shape = 'f32[1,128]{1,0:T(1,128)}', space=vmem, size = 0x200, scoped, tag = 'scratch operand']
  #allocation3 [shape = 'f32[1,128]{1,0:T(1,128)}', space=vmem, size = 0x200, scoped, tag = 'scratch operand']
  #allocation4 [shape = 'f32[1,128]{1,0:T(1,128)}', space=vmem, size = 0x200, scoped, tag = 'scratch operand']
  %s0 = inlined_call_operand.vmem [shape: bf16[2,64,32], index: 0, kind: input, shape index: {}]
  %s1 = inlined_call_operand.vmem [shape: bf16[2,32,128], index: 1, kind: input, shape index: {}]
  %s2 = inlined_call_operand.vmem [shape: f32[2,64,1], index: 2, kind: input, shape index: {}]
  %s3 = inlined_call_operand.vmem [shape: f32[2,1,128], index: 3, kind: input, shape index: {}]
  %s4 = inlined_call_operand.vmem [shape: f32[2,64,1], index: 4, kind: output, shape index: {0}]
  %s5 = inlined_call_operand.hbm [shape: f32[2,1,128], index: 5, kind: output, shape index: {1}]
  %s6 = inlined_call_operand.hbm [shape: f32[2,1,128], index: 6, kind: output, shape index: {2}]
  %7 = xla_tuple %s4, %s5, %s6
  %s8 = sld [smem:[#allocation0]]
  $region73: #{tpu_custom_call.1} parent=0
    _
  %s10 = ssub.s32 1, %s8
  %s11 = scalar_select 0, %s10, %s8
  $region1: #{tpu_custom_call.1} parent=0
    #allocation5 [shape = 'u8[1024]{0}', space=vmem, size = 0x400, scoped, tag = 'output window, operand 1']
    #allocation6 [shape = 's32[2]{0}', space=sflag, size = 0x8, scoped, tag = 'scoped memory for tpu_custom_call.1']
    #allocation7 [shape = 'u8[1024]{0}', space=vmem, size = 0x400, scoped, tag = 'output window, operand 2']
    #allocation8 [shape = 's32[2]{0}', space=sflag, size = 0x8, scoped, tag = 'scoped memory for tpu_custom_call.1']
    %12 = vsyncpa [#allocation6], 0
    %s13 = scalar_lea.sflag [#allocation6], 1
    %14 = vsyncpa %s13, 0
    %15 = vsyncpa [#allocation8], 0
    %s16 = scalar_lea.sflag [#allocation8], 1
    %17 = vsyncpa %s16, 0
    loop: start=0, step=1, limit=6
    $region2: #{tpu_custom_call.1} parent=1 // loop_pre_header
      _
    $region3: #{tpu_custom_call.1} parent=1 // loop_header
      %s19 = sphi 0, %s23
      %p20 = scmp.ge.s32.totalorder %s19, 6
      %s26 = sphi 0, %s38
      %s27 = sphi 0, %s34
      %s28 = sphi 0, %s26
      %s29 = sphi 0, %s27
      %s30 = sphi 0, %s28
      %s31 = sphi 0, %s29
      %s43 = sphi 0, %s45
      %s46 = sphi 0, %s43
      %s47 = sphi 0, %s46
      %s63 = sphi 0, %s47
      %s69 = sphi 0, %s71
      %s72 = sphi 0, %s69
      %s73 = sphi 0, %s72
      %s89 = sphi 0, %s73
      %s97 = sphi 0, %s99
      %s100 = sphi 0, %s97
      %s101 = sphi 0, %s100
      %s117 = sphi 0, %s101
      %s123 = sphi 0, %s125
      %s126 = sphi 0, %s123
      %s127 = sphi 0, %s126
      %s143 = sphi 0, %s127
      %s151 = sphi 0, %s153
      %s154 = sphi 0, %s151
      %s155 = sphi 0, %s154
      %s171 = sphi 0, %s155
      %s177 = sphi 0, %s179
      %s180 = sphi 0, %s177
      %s181 = sphi 0, %s180
      %s197 = sphi 0, %s181
      %s203 = sphi 0, %s205
      %s206 = sphi 0, %s203
      %s207 = sphi 0, %s206
      %s223 = sphi 0, %s207
    $region4: #{tpu_custom_call.1} parent=1 // loop_header_branch
      %22 = sbr.rel (%p20) target = $region8
    $region5: #{tpu_custom_call.1} parent=1 // loop_body
      %s24 = ssub.s32 %s19, 1
      %s25 = ssub.s32 %s19, 2
      %s32 = sadd.s32 1, %s27
      %p33 = scmp.ge.s32.totalorder %s32, 2
      %s34 = scalar_select %p33, 0, %s32
      %s35 = sadd.s32 1, %s26
      %s36 = scalar_select %p33, %s35, %s26
      %p37 = scmp.ge.s32.totalorder %s36, 2
      %s38 = scalar_select %p37, 0, %s36
      %s39 = ssub.s32 %s26, %s38
      %s40 = ssub.s32 %s27, %s34
      %s41 = sor.u32 %s39, %s40
      %p42 = scmp.eq.s32.totalorder %s41, 0
      %s44 = sadd.s32 %s43, 1
      %s45 = scalar_select %p42, %s43, %s44
      %p48 = pneg %p42
      %p49 = scmp.eq.s32.totalorder %s19, 3
      %p50 = por %p48, %p49
      %p51 = scmp.ne.s32.totalorder %s43, %s46
      %p52 = scmp.eq.s32.totalorder %s19, 0
      %p53 = por %p51, %p52
      %p54 = scmp.ne.s32.totalorder %s43, %s46
      %p55 = scmp.eq.s32.totalorder %s24, 3
      %p56 = por %p54, %p55
      %p57 = scmp.ne.s32.totalorder %s46, %s47
      %p58 = scmp.eq.s32.totalorder %s24, 0
      %p59 = por %p57, %p58
      %p60 = scmp.ne.s32.totalorder %s46, %s47
      %p61 = scmp.eq.s32.totalorder %s25, 3
      %p62 = por %p60, %p61
      %p64 = scmp.ne.s32.totalorder %s47, %s63
      %p65 = scmp.eq.s32.totalorder %s25, 0
      %p66 = por %p64, %p65
      %s67 = ssub.s32 %s26, %s38
      %p68 = scmp.eq.s32.totalorder %s67, 0
      %s70 = sadd.s32 %s69, 1
      %s71 = scalar_select %p68, %s69, %s70
      %p74 = pneg %p68
      %p75 = scmp.eq.s32.totalorder %s19, 3
      %p76 = por %p74, %p75
      %p77 = scmp.ne.s32.totalorder %s69, %s72
      %p78 = scmp.eq.s32.totalorder %s19, 0
      %p79 = por %p77, %p78
      %p80 = scmp.ne.s32.totalorder %s69, %s72
      %p81 = scmp.eq.s32.totalorder %s24, 3
      %p82 = por %p80, %p81
      %p83 = scmp.ne.s32.totalorder %s72, %s73
      %p84 = scmp.eq.s32.totalorder %s24, 0
      %p85 = por %p83, %p84
      %p86 = scmp.ne.s32.totalorder %s72, %s73
      %p87 = scmp.eq.s32.totalorder %s25, 3
      %p88 = por %p86, %p87
      %p90 = scmp.ne.s32.totalorder %s73, %s89
      %p91 = scmp.eq.s32.totalorder %s25, 0
      %p92 = por %p90, %p91
      %s93 = ssub.s32 %s26, %s38
      %s94 = ssub.s32 %s27, %s34
      %s95 = sor.u32 %s93, %s94
      %p96 = scmp.eq.s32.totalorder %s95, 0
      %s98 = sadd.s32 %s97, 1
      %s99 = scalar_select %p96, %s97, %s98
      %p102 = pneg %p96
      %p103 = scmp.eq.s32.totalorder %s19, 3
      %p104 = por %p102, %p103
      %p105 = scmp.ne.s32.totalorder %s97, %s100
      %p106 = scmp.eq.s32.totalorder %s19, 0
      %p107 = por %p105, %p106
      %p108 = scmp.ne.s32.totalorder %s97, %s100
      %p109 = scmp.eq.s32.totalorder %s24, 3
      %p110 = por %p108, %p109
      %p111 = scmp.ne.s32.totalorder %s100, %s101
      %p112 = scmp.eq.s32.totalorder %s24, 0
      %p113 = por %p111, %p112
      %p114 = scmp.ne.s32.totalorder %s100, %s101
      %p115 = scmp.eq.s32.totalorder %s25, 3
      %p116 = por %p114, %p115
      %p118 = scmp.ne.s32.totalorder %s101, %s117
      %p119 = scmp.eq.s32.totalorder %s25, 0
      %p120 = por %p118, %p119
      %s121 = ssub.s32 %s26, %s38
      %p122 = scmp.eq.s32.totalorder %s121, 0
      %s124 = sadd.s32 %s123, 1
      %s125 = scalar_select %p122, %s123, %s124
      %p128 = pneg %p122
      %p129 = scmp.eq.s32.totalorder %s19, 3
      %p130 = por %p128, %p129
      %p131 = scmp.ne.s32.totalorder %s123, %s126
      %p132 = scmp.eq.s32.totalorder %s19, 0
      %p133 = por %p131, %p132
      %p134 = scmp.ne.s32.totalorder %s123, %s126
      %p135 = scmp.eq.s32.totalorder %s24, 3
      %p136 = por %p134, %p135
      %p137 = scmp.ne.s32.totalorder %s126, %s127
      %p138 = scmp.eq.s32.totalorder %s24, 0
      %p139 = por %p137, %p138
      %p140 = scmp.ne.s32.totalorder %s126, %s127
      %p141 = scmp.eq.s32.totalorder %s25, 3
      %p142 = por %p140, %p141
      %p144 = scmp.ne.s32.totalorder %s127, %s143
      %p145 = scmp.eq.s32.totalorder %s25, 0
      %p146 = por %p144, %p145
      %s147 = ssub.s32 %s26, %s38
      %s148 = ssub.s32 %s27, %s34
      %s149 = sor.u32 %s147, %s148
      %p150 = scmp.eq.s32.totalorder %s149, 0
      %s152 = sadd.s32 %s151, 1
      %s153 = scalar_select %p150, %s151, %s152
      %p156 = pneg %p150
      %p157 = scmp.eq.s32.totalorder %s19, 3
      %p158 = por %p156, %p157
      %p159 = scmp.ne.s32.totalorder %s151, %s154
      %p160 = scmp.eq.s32.totalorder %s19, 0
      %p161 = por %p159, %p160
      %p162 = scmp.ne.s32.totalorder %s151, %s154
      %p163 = scmp.eq.s32.totalorder %s24, 3
      %p164 = por %p162, %p163
      %p165 = scmp.ne.s32.totalorder %s154, %s155
      %p166 = scmp.eq.s32.totalorder %s24, 0
      %p167 = por %p165, %p166
      %p168 = scmp.ne.s32.totalorder %s154, %s155
      %p169 = scmp.eq.s32.totalorder %s25, 3
      %p170 = por %p168, %p169
      %p172 = scmp.ne.s32.totalorder %s155, %s171
      %p173 = scmp.eq.s32.totalorder %s25, 0
      %p174 = por %p172, %p173
      %s175 = ssub.s32 %s26, %s38
      %p176 = scmp.eq.s32.totalorder %s175, 0
      %s178 = sadd.s32 %s177, 1
      %s179 = scalar_select %p176, %s177, %s178
      %p182 = pneg %p176
      %p183 = scmp.eq.s32.totalorder %s19, 3
      %p184 = por %p182, %p183
      %p185 = scmp.ne.s32.totalorder %s177, %s180
      %p186 = scmp.eq.s32.totalorder %s19, 0
      %p187 = por %p185, %p186
      %p188 = scmp.ne.s32.totalorder %s177, %s180
      %p189 = scmp.eq.s32.totalorder %s24, 3
      %p190 = por %p188, %p189
      %p191 = scmp.ne.s32.totalorder %s180, %s181
      %p192 = scmp.eq.s32.totalorder %s24, 0
      %p193 = por %p191, %p192
      %p194 = scmp.ne.s32.totalorder %s180, %s181
      %p195 = scmp.eq.s32.totalorder %s25, 3
      %p196 = por %p194, %p195
      %p198 = scmp.ne.s32.totalorder %s181, %s197
      %p199 = scmp.eq.s32.totalorder %s25, 0
      %p200 = por %p198, %p199
      %s201 = ssub.s32 %s26, %s38
      %p202 = scmp.eq.s32.totalorder %s201, 0
      %s204 = sadd.s32 %s203, 1
      %s205 = scalar_select %p202, %s203, %s204
      %p208 = pneg %p202
      %p209 = scmp.eq.s32.totalorder %s19, 3
      %p210 = por %p208, %p209
      %p211 = scmp.ne.s32.totalorder %s203, %s206
      %p212 = scmp.eq.s32.totalorder %s19, 0
      %p213 = por %p211, %p212
      %p214 = scmp.ne.s32.totalorder %s203, %s206
      %p215 = scmp.eq.s32.totalorder %s24, 3
      %p216 = por %p214, %p215
      %p217 = scmp.ne.s32.totalorder %s206, %s207
      %p218 = scmp.eq.s32.totalorder %s24, 0
      %p219 = por %p217, %p218
      %p220 = scmp.ne.s32.totalorder %s206, %s207
      %p221 = scmp.eq.s32.totalorder %s25, 3
      %p222 = por %p220, %p221
      %p224 = scmp.ne.s32.totalorder %s207, %s223
      %p225 = scmp.eq.s32.totalorder %s25, 0
      %p226 = por %p224, %p225
      %p227 = scmp.le.s32.totalorder 1, %s19
      %p228 = scmp.lt.s32.totalorder %s19, 5
      %p229 = pnand %p227, %p228
      %p230 = pneg %p229
      // Predicated region
      $region9: #{tpu_custom_call.1} parent=5 // pred_check
        _
      $region10: #{tpu_custom_call.1} parent=5 // pred_check_branch
        %232 = sbr.rel (%p229) target = $region12
      $region11: #{tpu_custom_call.1} parent=5 // pred_region
        %s233 = ssub.s32 %s19, 1
      $region12: #{tpu_custom_call.1} parent=5 // pred_fallthru
        _
      %p234 = scmp.lt.s32.totalorder %s19, 4
      // Predicated region
      $region13: #{tpu_custom_call.1} parent=5 // pred_check
        %p235 = pneg %p234
      $region14: #{tpu_custom_call.1} parent=5 // pred_check_branch
        %237 = sbr.rel (%p235) target = $region16
      $region15: #{tpu_custom_call.1} parent=5 // pred_region
        // Predicated region
        $region17: #{tpu_custom_call.1} parent=15 // pred_check
          %p238 = pneg %p53
        $region18: #{tpu_custom_call.1} parent=15 // pred_check_branch
          %240 = sbr.rel (%p238) target = $region20
        $region19: #{tpu_custom_call.1} parent=15 // pred_region
          %s241 = smul.u32 4, %s27
          %p242 = scmp.lt.s32.totalorder %s26, 1
          %s243 = scalar_select %p242, %s26, 1
          %p244 = scmp.lt.s32.totalorder %s241, 7
          %s245 = scalar_select %p244, %s241, 7
          %s246 = smul.addr %s243, 8
          %s247 = sadd.s32 %s245, %s246
          %s248 = smul.addr %s247, 4
          %s249 = scalar_lea.vmem %s0, %s248
          %s250 = smul.u32 4, %s27
        $region20: #{tpu_custom_call.1} parent=15 // pred_fallthru
          _
        // Predicated region
        $region21: #{tpu_custom_call.1} parent=15 // pred_check
          %p251 = pneg %p79
        $region22: #{tpu_custom_call.1} parent=15 // pred_check_branch
          %253 = sbr.rel (%p251) target = $region24
        $region23: #{tpu_custom_call.1} parent=15 // pred_region
          %p254 = scmp.lt.s32.totalorder %s26, 1
          %s255 = scalar_select %p254, %s26, 1
          %s256 = smul.addr %s255, 4
          %s257 = smul.addr %s256, 4
          %s258 = scalar_lea.vmem %s1, %s257
        $region24: #{tpu_custom_call.1} parent=15 // pred_fallthru
          _
        // Predicated region
        $region25: #{tpu_custom_call.1} parent=15 // pred_check
          %p259 = pneg %p107
        $region26: #{tpu_custom_call.1} parent=15 // pred_check_branch
          %261 = sbr.rel (%p259) target = $region28
        $region27: #{tpu_custom_call.1} parent=15 // pred_region
          %s262 = smul.u32 4, %s27
          %p263 = scmp.lt.s32.totalorder %s26, 1
          %s264 = scalar_select %p263, %s26, 1
          %p265 = scmp.lt.s32.totalorder %s262, 7
          %s266 = scalar_select %p265, %s262, 7
          %s267 = smul.addr %s264, 8
          %s268 = sadd.s32 %s266, %s267
          %s269 = smul.addr %s268, 8
          %s270 = scalar_lea.vmem %s2, %s269
          %s271 = smul.u32 4, %s27
        $region28: #{tpu_custom_call.1} parent=15 // pred_fallthru
          _
        // Predicated region
        $region29: #{tpu_custom_call.1} parent=15 // pred_check
          %p272 = pneg %p133
        $region30: #{tpu_custom_call.1} parent=15 // pred_check_branch
          %274 = sbr.rel (%p272) target = $region32
        $region31: #{tpu_custom_call.1} parent=15 // pred_region
          %p275 = scmp.lt.s32.totalorder %s26, 1
          %s276 = scalar_select %p275, %s26, 1
          %s277 = scalar_lea.vmem %s3, %s276
        $region32: #{tpu_custom_call.1} parent=15 // pred_fallthru
          _
      $region16: #{tpu_custom_call.1} parent=5 // pred_fallthru
        _
      %p278 = scmp.le.s32.totalorder 1, %s19
      %p279 = scmp.lt.s32.totalorder %s19, 5
      %p280 = pnand %p278, %p279
      %p281 = pneg %p280
      // Predicated region
      $region33: #{tpu_custom_call.1} parent=5 // pred_check
        _
      $region34: #{tpu_custom_call.1} parent=5 // pred_check_branch
        %283 = sbr.rel (%p280) target = $region36
      $region35: #{tpu_custom_call.1} parent=5 // pred_region
        %s284 = ssub.s32 %s19, 1
        %s285 = smul.u32 4, %s29
        %p286 = scmp.lt.s32.totalorder %s28, 1
        %s287 = scalar_select %p286, %s28, 1
        %p288 = scmp.lt.s32.totalorder %s285, 7
        %s289 = scalar_select %p288, %s285, 7
        %s290 = smul.addr %s287, 8
        %s291 = sadd.s32 %s289, %s290
        %s292 = smul.addr %s291, 4
        %s293 = scalar_lea.vmem %s0, %s292
        %p294 = pneg %p59
        %p295 = pneg %p56
        %p296 = scmp.lt.s32.totalorder %s28, 1
        %s297 = scalar_select %p296, %s28, 1
        %s298 = smul.addr %s297, 4
        %s299 = smul.addr %s298, 4
        %s300 = scalar_lea.vmem %s1, %s299
        %p301 = pneg %p85
        %p302 = pneg %p82
        %s303 = smul.u32 4, %s29
        %p304 = scmp.lt.s32.totalorder %s28, 1
        %s305 = scalar_select %p304, %s28, 1
        %p306 = scmp.lt.s32.totalorder %s303, 7
        %s307 = scalar_select %p306, %s303, 7
        %s308 = smul.addr %s305, 8
        %s309 = sadd.s32 %s307, %s308
        %s310 = smul.addr %s309, 8
        %s311 = scalar_lea.vmem %s2, %s310
        %p312 = pneg %p113
        %p313 = pneg %p110
        %p314 = scmp.lt.s32.totalorder %s28, 1
        %s315 = scalar_select %p314, %s28, 1
        %s316 = scalar_lea.vmem %s3, %s315
        %p317 = pneg %p139
        %p318 = pneg %p136
        %p319 = pneg %p167
        %p320 = pneg %p164
        %s321 = smul.u32 4, %s29
        %p322 = scmp.lt.s32.totalorder %s28, 1
        %s323 = scalar_select %p322, %s28, 1
        %p324 = scmp.lt.s32.totalorder %s321, 7
        %s325 = scalar_select %p324, %s321, 7
        %s326 = smul.addr %s323, 8
        %s327 = sadd.s32 %s325, %s326
        %s328 = smul.addr %s327, 8
        %s329 = scalar_lea.vmem %s4, %s328
        %p330 = pneg %p193
        %p331 = pneg %p190
        %s332 = sand.u32 %s180, 1
        %s333 = scalar_lea.sflag [#allocation6], %s332
        %s334 = sand.u32 %s180, 1
        %s335 = scalar_lea.vmem [#allocation5], %s334
        %p336 = pneg %p219
        %p337 = pneg %p216
        %s338 = sand.u32 %s206, 1
        %s339 = scalar_lea.sflag [#allocation8], %s338
        %s340 = sand.u32 %s206, 1
        %s341 = scalar_lea.vmem [#allocation7], %s340
        %s342 = smul.u32 4, %s29
        %p343 = scmp.lt.s32.totalorder %s28, 1
        %s344 = scalar_select %p343, %s28, 1
        %p345 = scmp.lt.s32.totalorder %s342, 7
        %s346 = scalar_select %p345, %s342, 7
        %s347 = smul.addr %s344, 8
        %s348 = sadd.s32 %s346, %s347
        %s349 = smul.addr %s348, 4
        %s350 = scalar_lea.vmem %s0, %s349
        %s351 = smul.u32 4, %s29
        %p352 = scmp.lt.s32.totalorder %s28, 1
        %s353 = scalar_select %p352, %s28, 1
        %s354 = smul.addr %s353, 4
        %s355 = smul.addr %s354, 4
        %s356 = scalar_lea.vmem %s1, %s355
        %s357 = smul.u32 4, %s29
        %p358 = scmp.lt.s32.totalorder %s28, 1
        %s359 = scalar_select %p358, %s28, 1
        %p360 = scmp.lt.s32.totalorder %s357, 7
        %s361 = scalar_select %p360, %s357, 7
        %s362 = smul.addr %s359, 8
        %s363 = sadd.s32 %s361, %s362
        %s364 = smul.addr %s363, 8
        %s365 = scalar_lea.vmem %s2, %s364
        %s366 = smul.u32 4, %s29
        %p367 = scmp.lt.s32.totalorder %s28, 1
        %s368 = scalar_select %p367, %s28, 1
        %s369 = scalar_lea.vmem %s3, %s368
        %s370 = smul.u32 4, %s29
        %p371 = scmp.lt.s32.totalorder %s28, 1
        %s372 = scalar_select %p371, %s28, 1
        %p373 = scmp.lt.s32.totalorder %s370, 7
        %s374 = scalar_select %p373, %s370, 7
        %s375 = smul.addr %s372, 8
        %s376 = sadd.s32 %s374, %s375
        %s377 = smul.addr %s376, 8
        %s378 = scalar_lea.vmem %s4, %s377
        %s379 = smul.u32 4, %s29
        %p381 = scmp.eq.s32.totalorder %s29, 0
        // Predicated region
        $region37: #{tpu_custom_call.1} parent=35 // pred_check
          %p382 = pneg %p381
        $region38: #{tpu_custom_call.1} parent=35 // pred_check_branch
          %384 = sbr.rel (%p382) target = $region40
        $region39: #{tpu_custom_call.1} parent=35 // pred_region
          %385 = vst [vmem:[#allocation2] sm:$0x1] -1e+30
          %386 = vst [vmem:[#allocation3] sm:$0x1] 0.0
          %387 = vst [vmem:[#allocation4] sm:$0x1] -1e+30
        $region40: #{tpu_custom_call.1} parent=35 // pred_fallthru
          _
        %v388 = vld [vmem:[%s350] sm:$0xf]
        %v389 = vld [vmem:[%s350 + $0x4] sm:$0xf]
        %v390 = vld [vmem:[%s350 + $0x8] sm:$0xf]
        %v391 = vld [vmem:[%s350 + $0xc] sm:$0xf]
        %v392 = vld [vmem:[%s356] sm:$0xf]
        %v393 = vld [vmem:[%s356 + $0x4] sm:$0xf]
        %v394 = vld [vmem:[%s356 + $0x8] sm:$0xf]
        %v395 = vld [vmem:[%s356 + $0xc] sm:$0xf]
        %v396 = vld [vmem:[%s365] sm:$0xff]
        %v397 = vld [vmem:[%s365 + $0x8] sm:$0xff]
        %v398 = vld [vmem:[%s365 + $0x10] sm:$0xff]
        %v399 = vld [vmem:[%s365 + $0x18] sm:$0xff]
        %v400 = vld [vmem:[%s369] sm:$0x1]
        %v405 = vunpack.c.l.b16 %v388
        %v406 = vunpack.c.l.b16 %v389
        %v407 = vunpack.c.l.b16 %v390
        %v408 = vunpack.c.l.b16 %v391
        %v409 = vpack.c.b16 %v406, %v405
        %v410 = vpack.c.b16 %v408, %v407
        %v415 = vunpack.c.l.b16 %v392
        %v416 = vunpack.c.l.b16 %v393
        %v417 = vunpack.c.l.b16 %v394
        %v418 = vunpack.c.l.b16 %v395
        %v419 = vpack.c.b16 %v416, %v415
        %v420 = vpack.c.b16 %v418, %v417
        %vm423 = vcmask 261120
        %v425 = vsel %vm423, %v409, 0
        %v428 = vsel %vm423, %v410, 0
        %430 = vmatprep.subr.bf16.mxu0 0
        %431 = vmatpush1.bf16.msra.mxu0 %v419
        %432 = vmatprep.subr.bf16.mxu0 0
        %433 = vmatpush1.bf16.msra.mxu0 %v420
        %434 = vmatprep.subr.bf16.mxu0 0
        %435 = vmatpush1.bf16.msra.mxu0 0
        %436 = vmatprep.subr.bf16.mxu0 0
        %437 = vmatpush1.bf16.msra.mxu0 0
        %438 = vmatprep.subr.bf16.mxu0 0
        %439 = vmatpush1.bf16.msra.mxu0 0
        %440 = vmatprep.subr.bf16.mxu0 0
        %441 = vmatpush1.bf16.msra.mxu0 0
        %442 = vmatprep.subr.bf16.mxu0 0
        %443 = vmatpush1.bf16.msra.mxu0 0
        %444 = vmatprep.subr.bf16.mxu0 0
        %445 = vmatpush1.bf16.msra.mxu0 0
        %446 = vmatprep.subr.bf16.mxu0 0
        %447 = vmatpush1.bf16.msra.mxu0 0
        %448 = vmatprep.subr.bf16.mxu0 0
        %449 = vmatpush1.bf16.msra.mxu0 0
        %450 = vmatprep.subr.bf16.mxu0 0
        %451 = vmatpush1.bf16.msra.mxu0 0
        %452 = vmatprep.subr.bf16.mxu0 0
        %453 = vmatpush1.bf16.msra.mxu0 0
        %454 = vmatprep.subr.bf16.mxu0 0
        %455 = vmatpush1.bf16.msra.mxu0 0
        %456 = vmatprep.subr.bf16.mxu0 0
        %457 = vmatpush1.bf16.msra.mxu0 0
        %458 = vmatprep.subr.bf16.mxu0 0
        %459 = vmatpush1.bf16.msra.mxu0 0
        %460 = vmatprep.subr.bf16.mxu0 0
        %461 = vmatpush1.bf16.msra.mxu0 0
        %462 = vmatprep.mubr.bf16.mxu0 0
        %463 = vmatmul.mubr.bf16.gmra.mrb[0].mxu0 %v425
        %v464 = vpop.f32.mrb[0].mxu0
        %v465 = vadd.f32 0.0, %v464
        %v466 = vpop.f32.mrb[0].mxu0
        %v467 = vpop.f32.mrb[0].mxu0
        %v468 = vadd.f32 0.0, %v467
        %v469 = vpop.f32.mrb[0].mxu0
        %470 = vmatprep.mubr.bf16.mxu0 0
        %471 = vmatmul.mubr.bf16.gmra.mrb[0].mxu0 %v428
        %v472 = vpop.f32.mrb[0].mxu0
        %v473 = vadd.f32 0.0, %v472
        %v474 = vpop.f32.mrb[0].mxu0
        %v475 = vpop.f32.mrb[0].mxu0
        %v476 = vadd.f32 0.0, %v475
        %v477 = vpop.f32.mrb[0].mxu0
        %478 = vdwg.mxu0
        %v479 = vmul.f32 %v465, 0.3125
        %v480 = vmul.f32 %v468, 0.3125
        %v481 = vmul.f32 %v473, 0.3125
        %v482 = vmul.f32 %v476, 0.3125
        %484 = vset.pattern.permute.xlu0 0
        %485 = vperm.xlu0 %484, %v396
        %v486 = vpop.permute.xlu0 %485
        %489 = vset.pattern.permute.xlu0 0
        %490 = vperm.xlu0 %489, %v397
        %v491 = vpop.permute.xlu0 %490
        %494 = vset.pattern.permute.xlu0 0
        %495 = vperm.xlu0 %494, %v398
        %v496 = vpop.permute.xlu0 %495
        %499 = vset.pattern.permute.xlu0 0
        %500 = vperm.xlu0 %499, %v399
        %v501 = vpop.permute.xlu0 %500
        %v503 = vadd.f32 %v479, %v486
        %v504 = vadd.f32 %v480, %v491
        %v505 = vadd.f32 %v481, %v496
        %v506 = vadd.f32 %v482, %v501
        %v508 = vlaneseq
        %v509 = vshrl.u32 %v508, 7
        %v510 = vsub.s32 0, %v509
        %v511 = vrot.slane %v400, %v510
        %v513 = vadd.f32 %v503, %v511
        %v514 = vadd.f32 %v504, %v511
        %v515 = vadd.f32 %v505, %v511
        %v516 = vadd.f32 %v506, %v511
        %517 = vmax.xlane.f32.xlu0 %v513
        %v518 = vpop.xlane.xlu0 %517
        %519 = vmax.xlane.f32.xlu0 %v514
        %v520 = vpop.xlane.xlu0 %519
        %521 = vmax.xlane.f32.xlu0 %v515
        %v522 = vpop.xlane.xlu0 %521
        %523 = vmax.xlane.f32.xlu0 %v516
        %v524 = vpop.xlane.xlu0 %523
        %v525 = vsub.f32 %v513, %v518
        %v526 = vsub.f32 %v514, %v520
        %v527 = vsub.f32 %v515, %v522
        %v528 = vsub.f32 %v516, %v524
        %v529 = vmul.f32 %v525, 1.442695
        %v530 = vpow.pop %v529
        %v531 = vmul.f32 %v526, 1.442695
        %v532 = vpow.pop %v531
        %v533 = vmul.f32 %v527, 1.442695
        %v534 = vpow.pop %v533
        %v535 = vmul.f32 %v528, 1.442695
        %v536 = vpow.pop %v535
        %537 = vadd.xlane.f32.xlu0 %v530
        %v538 = vpop.xlane.xlu0 %537
        %539 = vadd.xlane.f32.xlu0 %v532
        %v540 = vpop.xlane.xlu0 %539
        %541 = vadd.xlane.f32.xlu0 %v534
        %v542 = vpop.xlane.xlu0 %541
        %543 = vadd.xlane.f32.xlu0 %v536
        %v544 = vpop.xlane.xlu0 %543
        %v545 = vlog2.pop %v538
        %v546 = vmul.f32 %v545, 0.6931472
        %v547 = vlog2.pop %v540
        %v548 = vmul.f32 %v547, 0.6931472
        %v549 = vlog2.pop %v542
        %v550 = vmul.f32 %v549, 0.6931472
        %v551 = vlog2.pop %v544
        %v552 = vmul.f32 %v551, 0.6931472
        %v553 = vadd.f32 %v518, %v546
        %v554 = vadd.f32 %v520, %v548
        %v555 = vadd.f32 %v522, %v550
        %v556 = vadd.f32 %v524, %v552
        %vm557 = vcmask 7168
        %558 = vst.msk [vmem:[%s378] sm:$0xff] %vm557, %v553
        %559 = vst.msk [vmem:[%s378 + $0x8] sm:$0xff] %vm557, %v554
        %560 = vst.msk [vmem:[%s378 + $0x10] sm:$0xff] %vm557, %v555
        %561 = vst.msk [vmem:[%s378 + $0x18] sm:$0xff] %vm557, %v556
        %v562 = vmax.f32 %v513, %v514
        %v563 = vmax.f32 %v515, %v516
        %v564 = vmax.f32 %v562, %v563
        %v565 = vrot.slane %v564, 4
        %v566 = vmax.f32 %v564, %v565
        %v567 = vrot.slane %v566, 2
        %v568 = vmax.f32 %v566, %v567
        %v569 = vrot.slane %v568, 1
        %v570 = vmax.f32 %v568, %v569
        %v571 = vld [vmem:[#allocation2] sm:$0x1]
        %v572 = vmax.f32 %v571, %v570
        %v574 = vlaneseq
        %v575 = vshrl.u32 %v574, 7
        %v576 = vsub.s32 0, %v575
        %v577 = vrot.slane %v572, %v576
        %v579 = vsub.f32 %v513, %v577
        %v580 = vsub.f32 %v514, %v577
        %v581 = vsub.f32 %v515, %v577
        %v582 = vsub.f32 %v516, %v577
        %v583 = vmul.f32 %v579, 1.442695
        %v584 = vpow.pop %v583
        %v585 = vmul.f32 %v580, 1.442695
        %v586 = vpow.pop %v585
        %v587 = vmul.f32 %v581, 1.442695
        %v588 = vpow.pop %v587
        %v589 = vmul.f32 %v582, 1.442695
        %v590 = vpow.pop %v589
        %v591 = vadd.f32 %v584, %v586
        %v592 = vadd.f32 %v591, %v588
        %v593 = vadd.f32 %v592, %v590
        %v594 = vrot.slane %v593, 4
        %v595 = vadd.f32 %v593, %v594
        %v596 = vrot.slane %v595, 2
        %v597 = vadd.f32 %v595, %v596
        %v598 = vrot.slane %v597, 1
        %v599 = vadd.f32 %v597, %v598
        %v600 = vld [vmem:[#allocation3] sm:$0x1]
        %v601 = vsub.f32 %v571, %v572
        %v602 = vmul.f32 %v601, 1.442695
        %v603 = vpow.pop %v602
        %v604 = vmul.f32 %v600, %v603
        %v605 = vadd.f32 %v604, %v599
        %606 = vst [vmem:[#allocation3] sm:$0x1] %v605
        %607 = vst [vmem:[#allocation2] sm:$0x1] %v572
        %v608 = vmul.f32 %v513, 2.0
        %v609 = vmul.f32 %v514, 2.0
        %v610 = vmul.f32 %v515, 2.0
        %v611 = vmul.f32 %v516, 2.0
        %v612 = vsub.f32 %v608, %v553
        %v613 = vsub.f32 %v609, %v554
        %v614 = vsub.f32 %v610, %v555
        %v615 = vsub.f32 %v611, %v556
        %v616 = vld [vmem:[#allocation4] sm:$0x1]
        %v617 = vmax.f32 %v612, %v613
        %v618 = vmax.f32 %v614, %v615
        %v619 = vmax.f32 %v617, %v618
        %v620 = vrot.slane %v619, 4
        %v621 = vmax.f32 %v619, %v620
        %v622 = vrot.slane %v621, 2
        %v623 = vmax.f32 %v621, %v622
        %v624 = vrot.slane %v623, 1
        %v625 = vmax.f32 %v623, %v624
        %v626 = vmax.f32 %v616, %v625
        %627 = vst [vmem:[#allocation4] sm:$0x1] %v626
        %p628 = scmp.eq.s32.totalorder %s29, 1
        // Predicated region
        $region41: #{tpu_custom_call.1} parent=35 // pred_check
          %p629 = pneg %p628
        $region42: #{tpu_custom_call.1} parent=35 // pred_check_branch
          %631 = sbr.rel (%p629) target = $region44
        $region43: #{tpu_custom_call.1} parent=35 // pred_region
          %v632 = vld [vmem:[#allocation2] sm:$0x1]
          %v633 = vld [vmem:[#allocation3] sm:$0x1]
          %v634 = vlog2.pop %v633
          %v635 = vmul.f32 %v634, 0.6931472
          %v636 = vadd.f32 %v632, %v635
          %637 = vst [vmem:[%s335] sm:$0x1] %v636
          %v638 = vld [vmem:[#allocation4] sm:$0x1]
          %639 = vst [vmem:[%s341] sm:$0x1] %v638
        $region44: #{tpu_custom_call.1} parent=35 // pred_fallthru
          _
        %s640 = smul.u32 4, %s29
        %p641 = scmp.lt.s32.totalorder %s28, 1
        %s642 = scalar_select %p641, %s28, 1
        %p643 = scmp.lt.s32.totalorder %s640, 7
        %s644 = scalar_select %p643, %s640, 7
        %s645 = smul.addr %s642, 8
        %s646 = sadd.s32 %s644, %s645
        %s647 = smul.addr %s646, 8
        %s648 = scalar_lea.vmem %s4, %s647
        %s649 = sand.u32 %s180, 1
        %s650 = scalar_lea.sflag [#allocation6], %s649
        %s651 = sand.u32 %s180, 1
        %s652 = scalar_lea.vmem [#allocation5], %s651
        %s653 = sand.u32 %s206, 1
        %s654 = scalar_lea.sflag [#allocation8], %s653
        %s655 = sand.u32 %s206, 1
        %s656 = scalar_lea.vmem [#allocation7], %s655
        // Predicated region
        $region45: #{tpu_custom_call.1} parent=35 // pred_check
          %p657 = pneg %p164
        $region46: #{tpu_custom_call.1} parent=35 // pred_check_branch
          %659 = sbr.rel (%p657) target = $region48
        $region47: #{tpu_custom_call.1} parent=35 // pred_region
          %s660 = smul.u32 4, %s29
        $region48: #{tpu_custom_call.1} parent=35 // pred_fallthru
          _
        // Predicated region
        $region49: #{tpu_custom_call.1} parent=35 // pred_check
          %p661 = pneg %p190
        $region50: #{tpu_custom_call.1} parent=35 // pred_check_branch
          %663 = sbr.rel (%p661) target = $region52
        $region51: #{tpu_custom_call.1} parent=35 // pred_region
          %s665 = ssub.s32 16, 16
          %666 = vsyncadd %s650, %s665
          %s667 = smul.addr %s28, 16
          %s668 = scalar_lea.hbm %s5, %s667
          %s670 = sshll.u32 %s652, 4
          %s671 = int_to_ptr.vmem [resolvable:$true] %s670
          %673 = dma.vmem_to_hbm [thread:$0]  %s671, 16, %s668, %s650
        $region52: #{tpu_custom_call.1} parent=35 // pred_fallthru
          _
        // Predicated region
        $region53: #{tpu_custom_call.1} parent=35 // pred_check
          %p674 = pneg %p216
        $region54: #{tpu_custom_call.1} parent=35 // pred_check_branch
          %676 = sbr.rel (%p674) target = $region56
        $region55: #{tpu_custom_call.1} parent=35 // pred_region
          %s678 = ssub.s32 16, 16
          %679 = vsyncadd %s654, %s678
          %s680 = smul.addr %s28, 16
          %s681 = scalar_lea.hbm %s6, %s680
          %s683 = sshll.u32 %s656, 4
          %s684 = int_to_ptr.vmem [resolvable:$true] %s683
          %686 = dma.vmem_to_hbm [thread:$0]  %s684, 16, %s681, %s654
        $region56: #{tpu_custom_call.1} parent=35 // pred_fallthru
          _
      $region36: #{tpu_custom_call.1} parent=5 // pred_fallthru
        _
      %p687 = scmp.le.s32.totalorder 2, %s19
      // Predicated region
      $region57: #{tpu_custom_call.1} parent=5 // pred_check
        %p688 = pneg %p687
      $region58: #{tpu_custom_call.1} parent=5 // pred_check_branch
        %690 = sbr.rel (%p688) target = $region60
      $region59: #{tpu_custom_call.1} parent=5 // pred_region
        %s691 = ssub.s32 %s19, 2
        // Predicated region
        $region61: #{tpu_custom_call.1} parent=59 // pred_check
          %p692 = pneg %p170
        $region62: #{tpu_custom_call.1} parent=59 // pred_check_branch
          %694 = sbr.rel (%p692) target = $region64
        $region63: #{tpu_custom_call.1} parent=59 // pred_region
          %s695 = smul.u32 4, %s31
          %p696 = scmp.lt.s32.totalorder %s30, 1
          %s697 = scalar_select %p696, %s30, 1
          %p698 = scmp.lt.s32.totalorder %s695, 7
          %s699 = scalar_select %p698, %s695, 7
          %s700 = smul.addr %s697, 8
          %s701 = sadd.s32 %s699, %s700
          %s702 = smul.addr %s701, 8
          %s703 = scalar_lea.vmem %s4, %s702
        $region64: #{tpu_custom_call.1} parent=59 // pred_fallthru
          _
        // Predicated region
        $region65: #{tpu_custom_call.1} parent=59 // pred_check
          %p704 = pneg %p196
        $region66: #{tpu_custom_call.1} parent=59 // pred_check_branch
          %706 = sbr.rel (%p704) target = $region68
        $region67: #{tpu_custom_call.1} parent=59 // pred_region
          %s707 = sand.u32 %s181, 1
          %s708 = scalar_lea.sflag [#allocation6], %s707
          %s709 = sand.u32 %s181, 1
          %s710 = scalar_lea.vmem [#allocation5], %s709
          %711 = dma.done %s708, 16
        $region68: #{tpu_custom_call.1} parent=59 // pred_fallthru
          _
        // Predicated region
        $region69: #{tpu_custom_call.1} parent=59 // pred_check
          %p712 = pneg %p222
        $region70: #{tpu_custom_call.1} parent=59 // pred_check_branch
          %714 = sbr.rel (%p712) target = $region72
        $region71: #{tpu_custom_call.1} parent=59 // pred_region
          %s715 = sand.u32 %s207, 1
          %s716 = scalar_lea.sflag [#allocation8], %s715
          %s717 = sand.u32 %s207, 1
          %s718 = scalar_lea.vmem [#allocation7], %s717
          %719 = dma.done %s716, 16
        $region72: #{tpu_custom_call.1} parent=59 // pred_fallthru
          _
      $region60: #{tpu_custom_call.1} parent=5 // pred_fallthru
        _
    $region6: #{tpu_custom_call.1} parent=1 // loop_footer
      %s23 = sadd.s32 1, %s19
    $region7: #{tpu_custom_call.1} parent=1 // loop_footer_branch
      %18 = sbr.rel target = $region3
    $region8: #{tpu_custom_call.1} parent=1 // loop_exit
      _
    %720 = vsyncpa [#allocation6], 1
    %s721 = scalar_lea.sflag [#allocation6], 1
    %722 = vsyncpa %s721, 1
    %723 = vsyncpa [#allocation8], 1
    %s724 = scalar_lea.sflag [#allocation8], 1
    %725 = vsyncpa %s724, 1

</llo_original>
